<compile_context>
chip_gen: v7x
topology: tpu7x:2x2x1
jax: 0.10.0
libtpu: 0.0.40
codegen_flags: <defaults>
</compile_context>

<pallas_src>
import functools

import jax
import jax.numpy as jnp
from jax.experimental import pallas as pl
from jax.experimental.pallas import tpu as pltpu


def _round_up(a, m):
    return (a + m - 1) // m * m


def _cdiv(a, b):
    return (a + b - 1) // b


def _vmem_budget():
    """(scoped vmem_limit_bytes, tiling budget) derived from the chip."""
    try:
        cap = int(pltpu.get_tpu_info().vmem_capacity_bytes)
    except Exception:
        cap = 64 * 1024 * 1024              # conservative (v7x per-core VMEM)
    limit = min(cap // 2, 96 * 1024 * 1024)  # 32 MiB on v7x, 64 MiB on v5e/v6e
    return limit, int(limit * 0.75)          # keep headroom for temporaries


# ----------------------------------------------------------------------------
# Fused single-pass kernel: pool + conv + sigmoid + scale, one slab per step.
# ----------------------------------------------------------------------------
def _eca_fused_kernel(band_ref, x_ref, o_ref, *, inv_hw):
    x = x_ref[...]                                                   # (C, HW)
    c = x.shape[0]
    m = jnp.sum(x.astype(jnp.float32), axis=-1, keepdims=True) * inv_hw  # (C,1)
    # Turn the (C,1) mean column into a (1,C) row with exact elementwise ops
    # (put it on the diagonal of a (C,C) tile and reduce over sublanes); this
    # avoids tiny-transpose / MXU-precision issues.
    row = jax.lax.broadcasted_iota(jnp.int32, (c, c), 0)
    col = jax.lax.broadcasted_iota(jnp.int32, (c, c), 1)
    m_row = jnp.sum(jnp.where(row == col, jnp.broadcast_to(m, (c, c)), 0.0),
                    axis=0, keepdims=True)                           # (1, C)
    # Banded channel conv: conv[c] = sum_j band[c, j] * mean[j].
    conv = jnp.sum(band_ref[...] * m_row, axis=1, keepdims=True)     # (C, 1)
    attn = jax.nn.sigmoid(conv)                                      # f32
    o_ref[...] = (x * attn.astype(x.dtype)).astype(o_ref.dtype)


# ----------------------------------------------------------------------------
# Two-pass fallback: Pass 1 = tiled global-average-pool sums (f32 accumulate).
# ----------------------------------------------------------------------------
def _gap_sum_kernel(x_ref, sum_ref, *, hw, thw, ragged):
    t = pl.program_id(2)

    @pl.when(t == 0)
    def _():
        sum_ref[...] = jnp.zeros_like(sum_ref)

    xv = x_ref[...].astype(jnp.float32)                 # (tc, thw)
    if ragged:
        # Mask out-of-range lanes of the (possibly) ragged last HW tile so the
        # garbage in the padded edge block never pollutes the channel sums.
        lane = jax.lax.broadcasted_iota(jnp.int32, xv.shape, 1)
        xv = jnp.where(lane + t * thw < hw, xv, 0.0)
    sum_ref[...] += jnp.sum(xv, axis=-1, keepdims=True)


# ----------------------------------------------------------------------------
# Two-pass fallback: Pass 2 = streaming per-channel rescale.
# ----------------------------------------------------------------------------
def _scale_kernel(attn_ref, x_ref, o_ref):
    # attn_ref: (tc, 1) in x.dtype; multiply in the input dtype (bf16-friendly).
    o_ref[...] = x_ref[...] * attn_ref[...]


# ----------------------------------------------------------------------------
# Tiny XLA helpers (operate only on (k,) / (B, C) sized data).
# ----------------------------------------------------------------------------
def _band_matrix(w, c):
    """(C, C) f32 with band[c, j] = w[j - c + pad] (zero outside the band)."""
    k = w.shape[0]
    pad = (k - 1) // 2
    row = jnp.arange(c)[:, None]
    col = jnp.arange(c)[None, :]
    d = col - row + pad
    valid = (d >= 0) & (d < k)
    return jnp.where(valid, w.astype(jnp.float32)[jnp.where(valid, d, 0)], 0.0)


def _attn_from_sums(sums, w, hw):
    """Mean + Conv1d(1,1,k,pad=(k-1)//2,bias=False) + sigmoid on (B, C)."""
    y = sums[..., 0] * (1.0 / hw)                       # (B, C) f32
    k = w.shape[0]
    pad = (k - 1) // 2
    yp = jnp.pad(y, ((0, 0), (pad, pad)))
    conv = jnp.zeros_like(y)
    for i in range(k):                                  # k is small and static
        conv = conv + w[i].astype(jnp.float32) * yp[:, i:i + y.shape[1]]
    return jax.nn.sigmoid(conv)[..., None]              # (B, C, 1) f32


def _pick_tiles(C, HW, itemsize, budget, tile_hw, tile_c):
    # Channel tile (only tiled when C is too large for lane-dense HW tiles).
    if tile_c is not None:
        tc = max(1, min(tile_c, C))
    else:
        max_tc = budget // (4 * 512 * itemsize)
        tc = C if C <= max_tc else max_tc
    if tc < C:
        tc = max(8, (tc // 8) * 8)
        if tc >= C:
            tc = C

    hw_cap = _round_up(HW, 128)
    # Pass 1: only the input tile is big (output is a (tc,1) accumulator).
    t1 = (budget // (2 * tc * itemsize)) // 128 * 128
    thw1 = max(128, min(t1, hw_cap, 32768))
    # Pass 2: input + output tiles, both double-buffered.
    t2 = (budget // (4 * tc * itemsize)) // 128 * 128
    thw2 = max(128, min(t2, hw_cap, 32768))
    if tile_hw is not None:
        forced = max(128, min(_round_up(tile_hw, 128), hw_cap))
        thw1 = thw2 = forced
    return tc, thw1, thw2


def eca_forward(x, w, *, force_two_pass=False, tile_hw=None, tile_c=None):
    """x: (B, C, H, W) NCHW; w: (k,) Conv1d(1,1,k,bias=False) weight."""
    B, C, H, W = x.shape
    HW = H * W
    xf = x.reshape(B, C, HW)
    itemsize = jnp.dtype(x.dtype).itemsize
    vmem_limit, budget = _vmem_budget()

    # ----- fused single-pass path (1 read + 1 write of x) -----
    sub = {4: 8, 2: 16, 1: 32}.get(itemsize, 8)
    c_pad = _round_up(C, sub)
    hw_lanes = _round_up(HW, 128)
    slab = c_pad * hw_lanes * itemsize
    slab_f32 = c_pad * hw_lanes * 4
    band_bytes = _round_up(C, 8) * _round_up(C, 128) * 4
    fused_ok = (not force_two_pass and C <= 1024
                and 4 * slab + 2 * slab_f32 + 2 * band_bytes <= budget)

    if fused_ok:
        band = _band_matrix(w, C)                       # tiny XLA precompute
        out = pl.pallas_call(
            functools.partial(_eca_fused_kernel, inv_hw=1.0 / HW),
            out_shape=jax.ShapeDtypeStruct((B, C, HW), x.dtype),
            grid=(B,),
            in_specs=[
                pl.BlockSpec((C, C), lambda b: (0, 0)),          # resident band
                pl.BlockSpec((None, C, HW), lambda b: (b, 0, 0)),
            ],
            out_specs=pl.BlockSpec((None, C, HW), lambda b: (b, 0, 0)),
            compiler_params=pltpu.CompilerParams(
                dimension_semantics=("parallel",),
                vmem_limit_bytes=vmem_limit),
        )(band, xf)
        return out.reshape(B, C, H, W)

    # ----- two-pass streaming fallback (large slabs) -----
    tc, thw1, thw2 = _pick_tiles(C, HW, itemsize, budget, tile_hw, tile_c)
    nc = _cdiv(C, tc)
    nt1 = _cdiv(HW, thw1)
    nt2 = _cdiv(HW, thw2)

    # Pass 1: per-(batch, channel) spatial sums, f32 accumulator resident
    # across the (last, "arbitrary") HW-tile axis.  No wrapper-side padding:
    # the ragged last tile is masked inside the kernel.
    sums = pl.pallas_call(
        functools.partial(_gap_sum_kernel, hw=HW, thw=thw1,
                          ragged=(HW % thw1 != 0)),
        out_shape=jax.ShapeDtypeStruct((B, C, 1), jnp.float32),
        grid=(B, nc, nt1),
        in_specs=[pl.BlockSpec((None, tc, thw1), lambda b, c, t: (b, c, t))],
        out_specs=pl.BlockSpec((None, tc, 1), lambda b, c, t: (b, c, 0)),
        compiler_params=pltpu.CompilerParams(
            dimension_semantics=("parallel", "parallel", "arbitrary"),
            vmem_limit_bytes=vmem_limit),
    )(xf)

    # Tiny (B, C) glue: mean, k-tap channel conv, sigmoid (plain XLA).
    attn = _attn_from_sums(sums, w, HW).astype(x.dtype)          # (B, C, 1)

    # Pass 2: streaming rescale; edge blocks' out-of-range lanes are dropped
    # by Pallas, so no output slice / padded copy is needed.
    out = pl.pallas_call(
        _scale_kernel,
        out_shape=jax.ShapeDtypeStruct((B, C, HW), x.dtype),
        grid=(B, nc, nt2),
        in_specs=[
            pl.BlockSpec((None, tc, 1), lambda b, c, t: (b, c, 0)),     # attn
            pl.BlockSpec((None, tc, thw2), lambda b, c, t: (b, c, t)),  # x
        ],
        out_specs=pl.BlockSpec((None, tc, thw2), lambda b, c, t: (b, c, t)),
        compiler_params=pltpu.CompilerParams(
            dimension_semantics=("parallel", "parallel", "parallel"),
            vmem_limit_bytes=vmem_limit),
    )(attn, xf)

    return out.reshape(B, C, H, W)


def eca_reference(x, w):
    """Pure-JAX reference mirroring the PyTorch forward."""
    k = w.shape[0]
    pad = (k - 1) // 2
    y = jnp.mean(x.astype(jnp.float32), axis=(2, 3))     # (B, C)
    yp = jnp.pad(y, ((0, 0), (pad, pad)))
    conv = jnp.zeros_like(y)
    for i in range(k):
        conv = conv + w[i] * yp[:, i:i + y.shape[1]]
    attn = jax.nn.sigmoid(conv)[:, :, None, None]        # (B, C, 1, 1)
    return (x.astype(jnp.float32) * attn).astype(x.dtype)


if __name__ == "__main__":
    B, C, H, W = 2, 4, 16, 16
    k_size = 3

    key = jax.random.PRNGKey(0)
    kx, kw, kx2 = jax.random.split(key, 3)
    x = jax.random.normal(kx, (B, C, H, W), dtype=jnp.float32)
    # Deterministic synthetic Conv1d(1, 1, k_size, bias=False) weight.
    w = jax.random.normal(kw, (k_size,), dtype=jnp.float32) * 0.5

    # Fused single-pass path (small slab -> fits VMEM).
    out = jax.block_until_ready(eca_forward(x, w))
    ref = eca_reference(x, w)
    assert out.shape == (B, C, H, W)
    assert jnp.allclose(out, ref, atol=1e-5, rtol=1e-5)

    # Also exercise the two-pass fallback with ragged HW and ragged C tiles
    # (no wrapper padding/slicing; masking handles the tails in-kernel).
    x2 = jax.random.normal(kx2, (2, 12, 20, 20), dtype=jnp.float32)
    out2 = jax.block_until_ready(
        eca_forward(x2, w, force_two_pass=True, tile_hw=128, tile_c=8))
    ref2 = eca_reference(x2, w)
    assert out2.shape == x2.shape
    assert jnp.allclose(out2, ref2, atol=1e-5, rtol=1e-5)

    print("KERNEL_OK")
</pallas_src>

<mosaic_0001>
module attributes {stable_mosaic.version = 11 : i64} {
  func.func @_eca_fused_kernel(%arg0: i32, %arg1: memref<4x4xf32, #tpu.memory_space<vmem>>, %arg2: memref<1x4x256xf32, #tpu.memory_space<vmem>>, %arg3: memref<1x4x256xf32, #tpu.memory_space<vmem>>) attributes {dimension_semantics = [#tpu.dimension_semantics<parallel>], iteration_bounds = array<i64: 2>, scalar_prefetch = 0 : i64, scratch_operands = 0 : i64, tpu.core_type = #tpu.core_type<tc>, window_params = [{pipeline_mode = #tpu.pipeline_mode<synchronous>, transform_indices = @transform_0, window_bounds = array<i64: 4, 4>}, {transform_indices = @transform_1, window_bounds = array<i64: 1, 4, 256>}, {transform_indices = @transform_2, window_bounds = array<i64: 1, 4, 256>}]} {
    %c0 = arith.constant 0 : index
    %c0_0 = arith.constant 0 : index
    %c0_1 = arith.constant 0 : index
    %0 = vector.load %arg2[%c0, %c0_0, %c0_1] : memref<1x4x256xf32, #tpu.memory_space<vmem>>, vector<1x4x256xf32>
    %1 = vector.shape_cast %0 : vector<1x4x256xf32> to vector<4x256xf32>
    %cst = arith.constant dense<0.000000e+00> : vector<4xf32>
    %2 = vector.multi_reduction <add>, %1, %cst [1] : vector<4x256xf32> to vector<4xf32>
    %3 = vector.shape_cast %2 : vector<4xf32> to vector<4x1xf32>
    %cst_2 = arith.constant 3.906250e-03 : f32
    %4 = vector.broadcast %cst_2 : f32 to vector<4x1xf32>
    %5 = arith.mulf %3, %4 : vector<4x1xf32>
    %6 = tpu.iota {dimensions = array<i32: 0>} : vector<4x4xi32>
    %7 = tpu.iota {dimensions = array<i32: 1>} : vector<4x4xi32>
    %8 = arith.cmpi eq, %6, %7 : vector<4x4xi32>
    %9 = vector.shape_cast %5 : vector<4x1xf32> to vector<4x1xf32>
    %10 = vector.broadcast %9 : vector<4x1xf32> to vector<4x4xf32>
    %cst_3 = arith.constant 0.000000e+00 : f32
    %11 = vector.broadcast %cst_3 : f32 to vector<4x4xf32>
    %12 = arith.select %8, %10, %11 : vector<4x4xi1>, vector<4x4xf32>
    %cst_4 = arith.constant dense<0.000000e+00> : vector<4xf32>
    %13 = vector.multi_reduction <add>, %12, %cst_4 [0] : vector<4x4xf32> to vector<4xf32>
    %14 = vector.shape_cast %13 : vector<4xf32> to vector<1x4xf32>
    %c0_5 = arith.constant 0 : index
    %c0_6 = arith.constant 0 : index
    %15 = vector.load %arg1[%c0_5, %c0_6] : memref<4x4xf32, #tpu.memory_space<vmem>>, vector<4x4xf32>
    %16 = vector.broadcast %14 : vector<1x4xf32> to vector<4x4xf32>
    %17 = arith.mulf %15, %16 : vector<4x4xf32>
    %cst_7 = arith.constant dense<0.000000e+00> : vector<4xf32>
    %18 = vector.multi_reduction <add>, %17, %cst_7 [1] : vector<4x4xf32> to vector<4xf32>
    %19 = vector.shape_cast %18 : vector<4xf32> to vector<4x1xf32>
    %20 = arith.negf %19 : vector<4x1xf32>
    %21 = math.exp %20 : vector<4x1xf32>
    %cst_8 = arith.constant 1.000000e+00 : f32
    %22 = vector.broadcast %cst_8 : f32 to vector<4x1xf32>
    %23 = arith.addf %22, %21 : vector<4x1xf32>
    %24 = arith.divf %22, %23 : vector<4x1xf32>
    %25 = vector.broadcast %24 : vector<4x1xf32> to vector<4x256xf32>
    %26 = arith.mulf %1, %25 : vector<4x256xf32>
    %c0_9 = arith.constant 0 : index
    %c0_10 = arith.constant 0 : index
    %c0_11 = arith.constant 0 : index
    %27 = vector.load %arg3[%c0_9, %c0_10, %c0_11] : memref<1x4x256xf32, #tpu.memory_space<vmem>>, vector<1x4x256xf32>
    %28 = vector.shape_cast %27 : vector<1x4x256xf32> to vector<4x256xf32>
    %29 = vector.shape_cast %26 : vector<4x256xf32> to vector<1x4x256xf32>
    tpu.vector_store %arg3[%c0_9, %c0_10, %c0_11], %29 {strides = array<i32>} : memref<1x4x256xf32, #tpu.memory_space<vmem>>, vector<1x4x256xf32>,
    return
  }
  func.func @transform_0(%arg0: i32) -> (i32, i32) {
    %c0_i32 = arith.constant 0 : i32
    %c0_i32_0 = arith.constant 0 : i32
    %c0_i32_1 = arith.constant 0 : i32
    return %c0_i32, %c0_i32_0 : i32, i32
  }
  func.func @transform_1(%arg0: i32) -> (i32, i32, i32) {
    %c0_i32 = arith.constant 0 : i32
    %c0_i32_0 = arith.constant 0 : i32
    %c0_i32_1 = arith.constant 0 : i32
    return %arg0, %c0_i32, %c0_i32_0 : i32, i32, i32
  }
  func.func @transform_2(%arg0: i32) -> (i32, i32, i32) {
    %c0_i32 = arith.constant 0 : i32
    %c0_i32_0 = arith.constant 0 : i32
    %c0_i32_1 = arith.constant 0 : i32
    return %arg0, %c0_i32, %c0_i32_0 : i32, i32, i32
  }
}

</mosaic_0001>

<llo_original>
// kernel: tpu_custom_call.1
$region0: #{tpu_custom_call.1}
  #allocation0 [shape = 'u32[]', space=smem, size = 0x4, offset = 0x4, fixed_abs, tag = 'smem constant byte address 0x4 - core index']
  #allocation1 [shape = 'u32[144,128]{1,0:T(1,128)}', space=vmem, size = 0x12000, scoped, tag = 'internal scratch']
  %s0 = inlined_call_operand.hbm [shape: f32[4,4], index: 0, kind: input, shape index: {}]
  %s1 = inlined_call_operand.hbm [shape: f32[2,4,256], index: 1, kind: input, shape index: {}]
  %s2 = inlined_call_operand.hbm [shape: f32[2,4,256], index: 2, kind: output, shape index: {}]
  %s3 = sld [smem:[#allocation0]]
  $region49: #{tpu_custom_call.1} parent=0
    _
  %s5 = ssub.s32 1, %s3
  %s6 = scalar_select 0, %s5, %s3
  $region1: #{tpu_custom_call.1} parent=0
    #allocation2 [shape = 'u8[2048]{0}', space=vmem, size = 0x800, scoped, tag = 'input window, operand 0, single buffered']
    #allocation3 [shape = 's32[2]{0}', space=sflag, size = 0x8, scoped, tag = 'scoped memory for tpu_custom_call.1']
    #allocation4 [shape = 's32[2]{0}', space=sflag, size = 0x8, scoped, tag = 'scoped memory for tpu_custom_call.1']
    #allocation5 [shape = 'u8[8192]{0}', space=vmem, size = 0x2000, scoped, tag = 'input window, operand 1']
    #allocation6 [shape = 's32[2]{0}', space=sflag, size = 0x8, scoped, tag = 'scoped memory for tpu_custom_call.1']
    #allocation7 [shape = 'u8[8192]{0}', space=vmem, size = 0x2000, scoped, tag = 'output window, operand 0']
    %7 = vsyncpa [#allocation3], 0
    %8 = vsyncpa [#allocation6], 0
    %s9 = scalar_lea.sflag [#allocation6], 1
    %10 = vsyncpa %s9, 0
    %11 = vsyncpa [#allocation4], 0
    %s12 = scalar_lea.sflag [#allocation4], 1
    %13 = vsyncpa %s12, 0
    loop: start=0, step=1, limit=4
    $region2: #{tpu_custom_call.1} parent=1 // loop_pre_header
      _
    $region3: #{tpu_custom_call.1} parent=1 // loop_header
      %s15 = sphi 0, %s19
      %p16 = scmp.ge.s32.totalorder %s15, 4
      %s23 = sphi 0, %s23
      %s25 = sphi 0, %s23
      %s26 = sphi 0, %s25
      %s40 = sphi 0, %s26
      %s46 = sphi 0, %s48
      %s49 = sphi 0, %s46
      %s50 = sphi 0, %s49
      %s66 = sphi 0, %s50
      %s72 = sphi 0, %s74
      %s75 = sphi 0, %s72
      %s76 = sphi 0, %s75
      %s92 = sphi 0, %s76
    $region4: #{tpu_custom_call.1} parent=1 // loop_header_branch
      %18 = sbr.rel (%p16) target = $region8
    $region5: #{tpu_custom_call.1} parent=1 // loop_body
      %s20 = ssub.s32 %s15, 1
      %s21 = ssub.s32 %s15, 2
      %s22 = sadd.s32 %s15, 1
      %s24 = sadd.s32 %s23, 1
      %p27 = scmp.eq.s32.totalorder %s15, 1
      %p28 = scmp.ne.s32.totalorder %s23, %s25
      %p29 = scmp.eq.s32.totalorder %s15, 0
      %p30 = por %p28, %p29
      %p31 = scmp.ne.s32.totalorder %s23, %s25
      %p32 = scmp.eq.s32.totalorder %s20, 1
      %p33 = por %p31, %p32
      %p34 = scmp.ne.s32.totalorder %s25, %s26
      %p35 = scmp.eq.s32.totalorder %s20, 0
      %p36 = por %p34, %p35
      %p37 = scmp.ne.s32.totalorder %s25, %s26
      %p38 = scmp.eq.s32.totalorder %s21, 1
      %p39 = por %p37, %p38
      %p41 = scmp.ne.s32.totalorder %s26, %s40
      %p42 = scmp.eq.s32.totalorder %s21, 0
      %p43 = por %p41, %p42
      %s44 = ssub.s32 %s15, %s22
      %p45 = scmp.eq.s32.totalorder %s44, 0
      %s47 = sadd.s32 %s46, 1
      %s48 = scalar_select %p45, %s46, %s47
      %p51 = pneg %p45
      %p52 = scmp.eq.s32.totalorder %s15, 1
      %p53 = por %p51, %p52
      %p54 = scmp.ne.s32.totalorder %s46, %s49
      %p55 = scmp.eq.s32.totalorder %s15, 0
      %p56 = por %p54, %p55
      %p57 = scmp.ne.s32.totalorder %s46, %s49
      %p58 = scmp.eq.s32.totalorder %s20, 1
      %p59 = por %p57, %p58
      %p60 = scmp.ne.s32.totalorder %s49, %s50
      %p61 = scmp.eq.s32.totalorder %s20, 0
      %p62 = por %p60, %p61
      %p63 = scmp.ne.s32.totalorder %s49, %s50
      %p64 = scmp.eq.s32.totalorder %s21, 1
      %p65 = por %p63, %p64
      %p67 = scmp.ne.s32.totalorder %s50, %s66
      %p68 = scmp.eq.s32.totalorder %s21, 0
      %p69 = por %p67, %p68
      %s70 = ssub.s32 %s15, %s22
      %p71 = scmp.eq.s32.totalorder %s70, 0
      %s73 = sadd.s32 %s72, 1
      %s74 = scalar_select %p71, %s72, %s73
      %p77 = pneg %p71
      %p78 = scmp.eq.s32.totalorder %s15, 1
      %p79 = por %p77, %p78
      %p80 = scmp.ne.s32.totalorder %s72, %s75
      %p81 = scmp.eq.s32.totalorder %s15, 0
      %p82 = por %p80, %p81
      %p83 = scmp.ne.s32.totalorder %s72, %s75
      %p84 = scmp.eq.s32.totalorder %s20, 1
      %p85 = por %p83, %p84
      %p86 = scmp.ne.s32.totalorder %s75, %s76
      %p87 = scmp.eq.s32.totalorder %s20, 0
      %p88 = por %p86, %p87
      %p89 = scmp.ne.s32.totalorder %s75, %s76
      %p90 = scmp.eq.s32.totalorder %s21, 1
      %p91 = por %p89, %p90
      %p93 = scmp.ne.s32.totalorder %s76, %s92
      %p94 = scmp.eq.s32.totalorder %s21, 0
      %p95 = por %p93, %p94
      %p96 = scmp.le.s32.totalorder 1, %s15
      %p97 = scmp.lt.s32.totalorder %s15, 3
      %p98 = pnand %p96, %p97
      %p99 = pneg %p98
      // Predicated region
      $region9: #{tpu_custom_call.1} parent=5 // pred_check
        _
      $region10: #{tpu_custom_call.1} parent=5 // pred_check_branch
        %101 = sbr.rel (%p98) target = $region12
      $region11: #{tpu_custom_call.1} parent=5 // pred_region
        %s102 = ssub.s32 %s15, 1
        // Predicated region
        $region13: #{tpu_custom_call.1} parent=11 // pred_check
          %p103 = pneg %p36
        $region14: #{tpu_custom_call.1} parent=11 // pred_check_branch
          %105 = sbr.rel (%p103) target = $region16
        $region15: #{tpu_custom_call.1} parent=11 // pred_region
          %s107 = ssub.s32 64, 64
          %108 = vsyncadd [#allocation3], %s107
          %s110 = sshll.u32 [#allocation2], 4
          %s111 = int_to_ptr.vmem [resolvable:$true] %s110
          %113 = dma.hbm_to_vmem [thread:$0]  %s0, 64, %s111, [#allocation3]
        $region16: #{tpu_custom_call.1} parent=11 // pred_fallthru
          _
      $region12: #{tpu_custom_call.1} parent=5 // pred_fallthru
        _
      %p114 = scmp.lt.s32.totalorder %s15, 2
      // Predicated region
      $region17: #{tpu_custom_call.1} parent=5 // pred_check
        %p115 = pneg %p114
      $region18: #{tpu_custom_call.1} parent=5 // pred_check_branch
        %117 = sbr.rel (%p115) target = $region20
      $region19: #{tpu_custom_call.1} parent=5 // pred_region
        // Predicated region
        $region21: #{tpu_custom_call.1} parent=19 // pred_check
          %p118 = pneg %p56
        $region22: #{tpu_custom_call.1} parent=19 // pred_check_branch
          %120 = sbr.rel (%p118) target = $region24
        $region23: #{tpu_custom_call.1} parent=19 // pred_region
          %s121 = sand.u32 %s46, 1
          %s122 = scalar_lea.sflag [#allocation6], %s121
          %s123 = sand.u32 %s46, 1
          %s124 = smul.addr %s123, 8
          %s125 = scalar_lea.vmem [#allocation5], %s124
          %s127 = ssub.s32 128, 128
          %128 = vsyncadd %s122, %s127
          %s129 = smul.addr %s15, 2
          %s130 = smul.addr %s129, 64
          %s131 = scalar_lea.hbm %s1, %s130
          %s133 = sshll.u32 %s125, 4
          %s134 = int_to_ptr.vmem [resolvable:$true] %s133
          %136 = dma.hbm_to_vmem [thread:$0]  %s131, 128, %s134, %s122
        $region24: #{tpu_custom_call.1} parent=19 // pred_fallthru
          _
      $region20: #{tpu_custom_call.1} parent=5 // pred_fallthru
        _
      %p137 = scmp.le.s32.totalorder 1, %s15
      %p138 = scmp.lt.s32.totalorder %s15, 3
      %p139 = pnand %p137, %p138
      %p140 = pneg %p139
      // Predicated region
      $region25: #{tpu_custom_call.1} parent=5 // pred_check
        _
      $region26: #{tpu_custom_call.1} parent=5 // pred_check_branch
        %142 = sbr.rel (%p139) target = $region28
      $region27: #{tpu_custom_call.1} parent=5 // pred_region
        %s143 = ssub.s32 %s15, 1
        // Predicated region
        $region29: #{tpu_custom_call.1} parent=27 // pred_check
          %p144 = pneg %p36
        $region30: #{tpu_custom_call.1} parent=27 // pred_check_branch
          %146 = sbr.rel (%p144) target = $region32
        $region31: #{tpu_custom_call.1} parent=27 // pred_region
          %147 = dma.done [#allocation3], 64
        $region32: #{tpu_custom_call.1} parent=27 // pred_fallthru
          _
        %s148 = sand.u32 %s49, 1
        %s149 = scalar_lea.sflag [#allocation6], %s148
        %s150 = sand.u32 %s49, 1
        %s151 = smul.addr %s150, 8
        %s152 = scalar_lea.vmem [#allocation5], %s151
        // Predicated region
        $region33: #{tpu_custom_call.1} parent=27 // pred_check
          %p153 = pneg %p62
        $region34: #{tpu_custom_call.1} parent=27 // pred_check_branch
          %155 = sbr.rel (%p153) target = $region36
        $region35: #{tpu_custom_call.1} parent=27 // pred_region
          %156 = dma.done %s149, 128
        $region36: #{tpu_custom_call.1} parent=27 // pred_fallthru
          _
        %p157 = pneg %p36
        %p158 = pneg %p33
        %s159 = sand.u32 %s49, 1
        %s160 = scalar_lea.sflag [#allocation6], %s159
        %s161 = sand.u32 %s49, 1
        %s162 = smul.addr %s161, 8
        %s163 = scalar_lea.vmem [#allocation5], %s162
        %p164 = pneg %p62
        %p165 = pneg %p59
        %p166 = pneg %p88
        %p167 = pneg %p85
        %s168 = sand.u32 %s75, 1
        %s169 = scalar_lea.sflag [#allocation4], %s168
        %s170 = sand.u32 %s75, 1
        %s171 = smul.addr %s170, 8
        %s172 = scalar_lea.vmem [#allocation7], %s171
        %v173 = vld [vmem:[%s152] sm:$0xff]
        %v175 = vcombine.high %v173, %v173
        %vm177 = vcmask 1043456
        %v178 = vsel %vm177, %v173, 0.0
        %v179 = vsel %vm177, %v175, 0.0
        %v180 = vadd.f32 %v178, %v179
        %181 = vadd.xlane.f32.xlu0 %v180
        %v182 = vpop.xlane.xlu0 %181
        %v183 = vmul.f32 %v182, 0.00390625
        %v184 = vlaneseq
        %v185 = vshrl.u32 %v184, 7
        %v186 = vlaneseq
        %v187 = vand.u32 %v186, 127
        %vm188 = vcmp.eq.s32.totalorder %v185, %v187
        %v189 = vsel %vm188, %v183, 0.0
        %vm190 = vcmask 27648
        %v191 = vsel %vm190, %v189, 0.0
        %v192 = vrot.slane %v191, 4
        %v193 = vadd.f32 %v191, %v192
        %v194 = vrot.slane %v193, 2
        %v195 = vadd.f32 %v193, %v194
        %v196 = vrot.slane %v195, 1
        %v197 = vadd.f32 %v195, %v196
        %v198 = vld [vmem:[#allocation2] sm:$0xf]
        %v199 = vmul.f32 %v198, %v197
        %v200 = vsel %vm190, %v199, 0.0
        %201 = vadd.xlane.f32.xlu0 %v200
        %v202 = vpop.xlane.xlu0 %201
        %v203 = vxor.u32 %v202, 2147483648
        %v204 = vmul.f32 %v203, 1.442695
        %v205 = vpow.pop %v204
        %v206 = vadd.f32 %v205, 1.0
        %v207 = vrcp.pop %v206
        %v208 = vmul.f32 1.0, %v207
        %v211 = vunpack.c.l.s4 839922192
        %v212 = vunpack.c.0.s8 %v211
        %v213 = vlaneseq
        %v214 = vshrl.u32 %v213, 7
        %v215 = vsub.s32 %v212, %v214
        %v216 = vrot.slane %v208, %v215
        %v218 = vmul.f32 %v173, %v216
        %219 = vst [vmem:[%s172] sm:$0xff] %v218
        %s220 = sand.u32 %s75, 1
        %s221 = scalar_lea.sflag [#allocation4], %s220
        %s222 = sand.u32 %s75, 1
        %s223 = smul.addr %s222, 8
        %s224 = scalar_lea.vmem [#allocation7], %s223
        // Predicated region
        $region37: #{tpu_custom_call.1} parent=27 // pred_check
          %p225 = pneg %p85
        $region38: #{tpu_custom_call.1} parent=27 // pred_check_branch
          %227 = sbr.rel (%p225) target = $region40
        $region39: #{tpu_custom_call.1} parent=27 // pred_region
          %s229 = ssub.s32 128, 128
          %230 = vsyncadd %s221, %s229
          %s231 = smul.addr %s20, 2
          %s232 = smul.addr %s231, 64
          %s233 = scalar_lea.hbm %s2, %s232
          %s235 = sshll.u32 %s224, 4
          %s236 = int_to_ptr.vmem [resolvable:$true] %s235
          %238 = dma.vmem_to_hbm [thread:$0]  %s236, 128, %s233, %s221
        $region40: #{tpu_custom_call.1} parent=27 // pred_fallthru
          _
      $region28: #{tpu_custom_call.1} parent=5 // pred_fallthru
        _
      %p239 = scmp.le.s32.totalorder 2, %s15
      // Predicated region
      $region41: #{tpu_custom_call.1} parent=5 // pred_check
        %p240 = pneg %p239
      $region42: #{tpu_custom_call.1} parent=5 // pred_check_branch
        %242 = sbr.rel (%p240) target = $region44
      $region43: #{tpu_custom_call.1} parent=5 // pred_region
        %s243 = ssub.s32 %s15, 2
        // Predicated region
        $region45: #{tpu_custom_call.1} parent=43 // pred_check
          %p244 = pneg %p91
        $region46: #{tpu_custom_call.1} parent=43 // pred_check_branch
          %246 = sbr.rel (%p244) target = $region48
        $region47: #{tpu_custom_call.1} parent=43 // pred_region
          %s247 = sand.u32 %s76, 1
          %s248 = scalar_lea.sflag [#allocation4], %s247
          %s249 = sand.u32 %s76, 1
          %s250 = smul.addr %s249, 8
          %s251 = scalar_lea.vmem [#allocation7], %s250
          %252 = dma.done %s248, 128
        $region48: #{tpu_custom_call.1} parent=43 // pred_fallthru
          _
      $region44: #{tpu_custom_call.1} parent=5 // pred_fallthru
        _
    $region6: #{tpu_custom_call.1} parent=1 // loop_footer
      %s19 = sadd.s32 1, %s15
    $region7: #{tpu_custom_call.1} parent=1 // loop_footer_branch
      %14 = sbr.rel target = $region3
    $region8: #{tpu_custom_call.1} parent=1 // loop_exit
      _
    %253 = vsyncpa [#allocation3], 1
    %s254 = scalar_lea.sflag [#allocation3], 1
    %255 = vsyncpa %s254, 1
    %256 = vsyncpa [#allocation6], 1
    %s257 = scalar_lea.sflag [#allocation6], 1
    %258 = vsyncpa %s257, 1
    %259 = vsyncpa [#allocation4], 1
    %s260 = scalar_lea.sflag [#allocation4], 1
    %261 = vsyncpa %s260, 1

</llo_original>
